<compile_context>
chip_gen: v5e
topology: v5e:2x2
jax: 0.10.0
libtpu: 0.0.40
codegen_flags: <defaults>
</compile_context>

<pallas_src>
import functools

import jax
import jax.numpy as jnp
import numpy as np
from jax.experimental import pallas as pl
from jax.experimental.pallas import tpu as pltpu

_SMOOTH = 1e-5
_LANES = 128
_PAD_LOGIT = -30.0                      # sigmoid(-30) ~ 9e-14: no visible contamination
# 2 inputs x 2 pipeline buffers of (B, block_rows, 128) must fit this budget.
_VMEM_BLOCK_BUDGET = 16 * 1024 * 1024
# Only split into multiple grid steps when each chunk moves at least ~1 MiB
# (per-step overhead ~0.35us; below that the split is pure overhead on 1-TC parts).
_MIN_SPLIT_BYTES = 2 * 1024 * 1024


def _cdiv(a, b):
    return -(-a // b)


def _round_up(v, m):
    return _cdiv(v, m) * m


def _dice_partial_kernel(x_ref, t_ref, o_ref):
    """One grid step: per-sample, per-lane partial sums over a (B, TR, 128) tile."""
    x = x_ref[...].astype(jnp.float32)          # (B, TR, 128) logits
    t = t_ref[...].astype(jnp.float32)          # (B, TR, 128) targets

    # sigmoid(x) = 0.5 * tanh(0.5 * x) + 0.5  (single EUP transcendental).
    s = 0.5 * jnp.tanh(0.5 * x) + 0.5
    out = (x > 0.0).astype(jnp.float32)         # == (sigmoid(x) > 0.5), exact on the logit
    gt = (t > 0.5).astype(jnp.float32)

    def rowsum(v):                              # (B, TR, 128) -> (B, 128) per-lane partials
        return jnp.sum(v, axis=1)

    # One lane-dense (1, 4, B, 128) output block per grid step.
    o_ref[0, 0, :, :] = rowsum(s * t)           # soft intersect partial
    o_ref[0, 1, :, :] = rowsum(s * s + t * t)   # z_sum + y_sum partial
    o_ref[0, 2, :, :] = rowsum(out * gt)        # hard intersection (per-sample)
    o_ref[0, 3, :, :] = rowsum(out + gt)        # |out| + |gt|      (per-sample)


def _choose_tiling(rows, batch, x_item, t_item, block_rows):
    """Pick (block_rows, n_chunks); n_chunks * block_rows covers `rows` exactly."""
    if block_rows is not None:
        tr = min(_round_up(int(block_rows), 8), _round_up(rows, 8))
        return tr, _cdiv(rows, tr)
    per_row = 2 * batch * _LANES * (x_item + t_item)        # 2 pipeline buffers, 2 inputs
    cap_rows = max(8, (_VMEM_BLOCK_BUDGET // per_row) // 8 * 8)
    total_bytes = batch * rows * _LANES * (x_item + t_item)
    if rows <= cap_rows and total_bytes < _MIN_SPLIT_BYTES:
        return rows, 1                                      # one full, mask-free block
    n_k = 2                                                 # even number of equal chunks
    while _round_up(_cdiv(rows, n_k), 8) > cap_rows:
        n_k += 2
    return _round_up(_cdiv(rows, n_k), 8), n_k


@functools.partial(jax.jit, static_argnames=("softmax", "block_rows"))
def dice_loss_forward(inputs, target, weight=None, softmax=False, block_rows=None):
    """Pallas equivalent of DiceLoss.forward on (B, H, W) tensors."""
    del weight  # unused by the PyTorch forward as well
    if softmax:
        # torch.softmax(inputs, dim=1) on (B, H, W) -> softmax over H; the
        # PyTorch module then applies sigmoid on top (kept for spec fidelity).
        # TODO(synk): fuse this softmax into the kernel if this path is ever hot.
        inputs = jax.nn.softmax(inputs, axis=1)
    assert inputs.shape == target.shape, (
        f"predict {inputs.shape} & target {target.shape} shape do not match")

    B, H, W = inputs.shape
    hw = H * W

    # Keep floating dtypes as-is; lift bool/int targets to bf16 (0/1 exact),
    # halving target DMA bytes vs f32.  The f32 cast happens in-kernel.
    if not jnp.issubdtype(target.dtype, jnp.floating):
        target = target.astype(jnp.bfloat16)
    if not jnp.issubdtype(inputs.dtype, jnp.floating):
        inputs = inputs.astype(jnp.float32)

    rows = _cdiv(hw, _LANES)
    tr, n_k = _choose_tiling(rows, B, inputs.dtype.itemsize, target.dtype.itemsize,
                             block_rows)
    rows_pad = n_k * tr
    pad = rows_pad * _LANES - hw

    x = inputs.reshape(B, hw)
    t = target.reshape(B, hw)
    if pad:
        # One contiguous pad; padded logits are -30 (sigmoid ~ 1e-13, hard out = 0)
        # and padded targets are 0, so all sums stay (numerically) exact.
        x = jnp.pad(x, ((0, 0), (0, pad)), constant_values=_PAD_LOGIT)
        t = jnp.pad(t, ((0, 0), (0, pad)), constant_values=0.0)
    x3 = x.reshape(B, rows_pad, _LANES)
    t3 = t.reshape(B, rows_pad, _LANES)

    in_spec = pl.BlockSpec((B, tr, _LANES), lambda k: (0, k, 0))
    out_spec = pl.BlockSpec((1, 4, B, _LANES), lambda k: (k, 0, 0, 0))
    out_shape = jax.ShapeDtypeStruct((n_k, 4, B, _LANES), jnp.float32)

    elems = B * rows_pad * _LANES
    cost = pl.CostEstimate(
        flops=15 * elems,
        transcendentals=elems,
        bytes_accessed=(x3.size * x3.dtype.itemsize
                        + t3.size * t3.dtype.itemsize
                        + n_k * 4 * B * _LANES * 4))

    parts = pl.pallas_call(
        _dice_partial_kernel,
        out_shape=out_shape,
        grid_spec=pltpu.PrefetchScalarGridSpec(
            num_scalar_prefetch=0,
            grid=(n_k,),
            in_specs=[in_spec, in_spec],
            out_specs=out_spec,
        ),
        compiler_params=pltpu.CompilerParams(
            dimension_semantics=("parallel",),   # each step writes a distinct block
            vmem_limit_bytes=48 * 1024 * 1024,
        ),
        cost_estimate=cost,
    )(x3, t3)

    # Tiny JAX epilogue: fold chunks and lanes, then form the three outputs.
    stats = parts.sum(axis=(0, 3))               # (4, B)
    intersect = stats[0].sum()
    soft_den = stats[1].sum()                    # z_sum + y_sum
    loss = 1.0 - (2.0 * intersect + _SMOOTH) / (soft_den + _SMOOTH)

    hi = stats[2]                                # (B,) hard intersection
    uni = stats[3]                               # (B,) |out| + |gt|
    dice_metric = 2.0 * hi / (uni + _SMOOTH)
    dice_sum = dice_metric.sum()
    # dice_metric == 0  <=>  hi == 0; hi is whole-valued (exact in f32 up to
    # 2^24 foreground pixels per sample), so compare against 0.5.
    num_zero = jnp.sum(hi < 0.5).astype(jnp.int32)
    return loss, dice_sum, num_zero


def dice_loss_reference(inputs, target, softmax=False):
    """Pure-JAX reference mirroring the PyTorch module."""
    if softmax:
        inputs = jax.nn.softmax(inputs, axis=1)
    s = jax.nn.sigmoid(inputs.astype(jnp.float32))
    t = target.astype(jnp.float32)
    intersect = jnp.sum(s * t)
    y_sum = jnp.sum(t * t)
    z_sum = jnp.sum(s * s)
    loss = 1.0 - (2.0 * intersect + _SMOOTH) / (z_sum + y_sum + _SMOOTH)
    out = (s > 0.5).astype(jnp.float32)
    gt = (t > 0.5).astype(jnp.float32)
    inter = jnp.sum(out * gt, axis=(1, 2))
    uni = jnp.sum(out, axis=(1, 2)) + jnp.sum(gt, axis=(1, 2))
    dm = 2.0 * inter / (uni + _SMOOTH)
    n_zero = dm.shape[0] - jnp.count_nonzero(dm)
    return loss, jnp.sum(dm), n_zero


if __name__ == "__main__":
    key = jax.random.PRNGKey(0)
    k1, k2, k3, k4 = jax.random.split(key, 4)

    # Case 1: small module-consistent shape; single full block (1 grid step).
    # Bool targets exercise the bf16 target-DMA path.
    B, H, W = 2, 16, 16
    inputs = jax.random.normal(k1, (B, H, W), dtype=jnp.float32)      # logits
    target = jax.random.uniform(k2, (B, H, W)) > 0.5                  # bool mask

    loss, dice_sum, num_zero = dice_loss_forward(inputs, target)
    jax.block_until_ready((loss, dice_sum, num_zero))

    ref_loss, ref_dsum, ref_nz = dice_loss_reference(inputs, target)
    np.testing.assert_allclose(np.asarray(loss), np.asarray(ref_loss), rtol=2e-3, atol=2e-3)
    np.testing.assert_allclose(np.asarray(dice_sum), np.asarray(ref_dsum), rtol=1e-5, atol=1e-5)
    assert int(num_zero) == int(ref_nz)

    # Case 2: force the multi-chunk + row-padded path (rows=18, block_rows=8 ->
    # 3 parallel chunks, 6 benign padded rows) to exercise the general path.
    B2, H2, W2 = 2, 48, 48
    x2 = jax.random.normal(k3, (B2, H2, W2), dtype=jnp.float32)
    t2 = (jax.random.uniform(k4, (B2, H2, W2)) > 0.5).astype(jnp.float32)

    l2, d2, n2 = dice_loss_forward(x2, t2, block_rows=8)
    jax.block_until_ready((l2, d2, n2))

    rl2, rd2, rn2 = dice_loss_reference(x2, t2)
    np.testing.assert_allclose(np.asarray(l2), np.asarray(rl2), rtol=2e-3, atol=2e-3)
    np.testing.assert_allclose(np.asarray(d2), np.asarray(rd2), rtol=1e-5, atol=1e-5)
    assert int(n2) == int(rn2)

    print("KERNEL_OK")
</pallas_src>

<mosaic_0001>
module attributes {stable_mosaic.version = 11 : i64} {
  func.func @_dice_partial_kernel(%arg0: i32, %arg1: memref<2x2x128xf32, #tpu.memory_space<vmem>>, %arg2: memref<2x2x128xbf16, #tpu.memory_space<vmem>>, %arg3: memref<1x4x2x128xf32, #tpu.memory_space<vmem>>) attributes {dimension_semantics = [#tpu.dimension_semantics<parallel>], iteration_bounds = array<i64: 1>, scalar_prefetch = 0 : i64, scratch_operands = 0 : i64, tpu.core_type = #tpu.core_type<tc>, window_params = [{transform_indices = @transform_0, window_bounds = array<i64: 2, 2, 128>}, {transform_indices = @transform_1, window_bounds = array<i64: 2, 2, 128>}, {transform_indices = @transform_2, window_bounds = array<i64: 1, 4, 2, 128>}]} {
    %c0 = arith.constant 0 : index
    %c0_0 = arith.constant 0 : index
    %c0_1 = arith.constant 0 : index
    %0 = vector.load %arg1[%c0, %c0_0, %c0_1] : memref<2x2x128xf32, #tpu.memory_space<vmem>>, vector<2x2x128xf32>
    %c0_2 = arith.constant 0 : index
    %c0_3 = arith.constant 0 : index
    %c0_4 = arith.constant 0 : index
    %1 = vector.load %arg2[%c0_2, %c0_3, %c0_4] : memref<2x2x128xbf16, #tpu.memory_space<vmem>>, vector<2x2x128xbf16>
    %2 = arith.extf %1 : vector<2x2x128xbf16> to vector<2x2x128xf32>
    %cst = arith.constant 5.000000e-01 : f32
    %3 = vector.broadcast %cst : f32 to vector<2x2x128xf32>
    %4 = arith.mulf %3, %0 : vector<2x2x128xf32>
    %5 = math.tanh %4 : vector<2x2x128xf32>
    %cst_5 = arith.constant 5.000000e-01 : f32
    %6 = vector.broadcast %cst_5 : f32 to vector<2x2x128xf32>
    %7 = arith.mulf %6, %5 : vector<2x2x128xf32>
    %cst_6 = arith.constant 5.000000e-01 : f32
    %8 = vector.broadcast %cst_6 : f32 to vector<2x2x128xf32>
    %9 = arith.addf %7, %8 : vector<2x2x128xf32>
    %cst_7 = arith.constant 0.000000e+00 : f32
    %10 = vector.broadcast %cst_7 : f32 to vector<2x2x128xf32>
    %11 = arith.cmpf ogt, %0, %10 : vector<2x2x128xf32>
    %12 = arith.extui %11 : vector<2x2x128xi1> to vector<2x2x128xi32>
    %13 = arith.sitofp %12 : vector<2x2x128xi32> to vector<2x2x128xf32>
    %cst_8 = arith.constant 5.000000e-01 : f32
    %14 = vector.broadcast %cst_8 : f32 to vector<2x2x128xf32>
    %15 = arith.cmpf ogt, %2, %14 : vector<2x2x128xf32>
    %16 = arith.extui %15 : vector<2x2x128xi1> to vector<2x2x128xi32>
    %17 = arith.sitofp %16 : vector<2x2x128xi32> to vector<2x2x128xf32>
    %18 = arith.mulf %9, %2 : vector<2x2x128xf32>
    %cst_9 = arith.constant dense<0.000000e+00> : vector<2x128xf32>
    %19 = vector.multi_reduction <add>, %18, %cst_9 [1] : vector<2x2x128xf32> to vector<2x128xf32>
    %c0_10 = arith.constant 0 : index
    %c0_11 = arith.constant 0 : index
    %c0_12 = arith.constant 0 : index
    %c0_13 = arith.constant 0 : index
    %20 = vector.load %arg3[%c0_10, %c0_11, %c0_12, %c0_13] : memref<1x4x2x128xf32, #tpu.memory_space<vmem>>, vector<1x1x2x128xf32>
    %21 = vector.shape_cast %20 : vector<1x1x2x128xf32> to vector<2x128xf32>
    %22 = vector.shape_cast %19 : vector<2x128xf32> to vector<1x1x2x128xf32>
    tpu.vector_store %arg3[%c0_10, %c0_11, %c0_12, %c0_13], %22 {strides = array<i32>} : memref<1x4x2x128xf32, #tpu.memory_space<vmem>>, vector<1x1x2x128xf32>,
    %23 = arith.mulf %9, %9 : vector<2x2x128xf32>
    %24 = arith.mulf %2, %2 : vector<2x2x128xf32>
    %25 = arith.addf %23, %24 : vector<2x2x128xf32>
    %cst_14 = arith.constant dense<0.000000e+00> : vector<2x128xf32>
    %26 = vector.multi_reduction <add>, %25, %cst_14 [1] : vector<2x2x128xf32> to vector<2x128xf32>
    %c0_15 = arith.constant 0 : index
    %c1 = arith.constant 1 : index
    %c0_16 = arith.constant 0 : index
    %c0_17 = arith.constant 0 : index
    %27 = vector.load %arg3[%c0_15, %c1, %c0_16, %c0_17] : memref<1x4x2x128xf32, #tpu.memory_space<vmem>>, vector<1x1x2x128xf32>
    %28 = vector.shape_cast %27 : vector<1x1x2x128xf32> to vector<2x128xf32>
    %29 = vector.shape_cast %26 : vector<2x128xf32> to vector<1x1x2x128xf32>
    tpu.vector_store %arg3[%c0_15, %c1, %c0_16, %c0_17], %29 {strides = array<i32>} : memref<1x4x2x128xf32, #tpu.memory_space<vmem>>, vector<1x1x2x128xf32>,
    %30 = arith.mulf %13, %17 : vector<2x2x128xf32>
    %cst_18 = arith.constant dense<0.000000e+00> : vector<2x128xf32>
    %31 = vector.multi_reduction <add>, %30, %cst_18 [1] : vector<2x2x128xf32> to vector<2x128xf32>
    %c0_19 = arith.constant 0 : index
    %c2 = arith.constant 2 : index
    %c0_20 = arith.constant 0 : index
    %c0_21 = arith.constant 0 : index
    %32 = vector.load %arg3[%c0_19, %c2, %c0_20, %c0_21] : memref<1x4x2x128xf32, #tpu.memory_space<vmem>>, vector<1x1x2x128xf32>
    %33 = vector.shape_cast %32 : vector<1x1x2x128xf32> to vector<2x128xf32>
    %34 = vector.shape_cast %31 : vector<2x128xf32> to vector<1x1x2x128xf32>
    tpu.vector_store %arg3[%c0_19, %c2, %c0_20, %c0_21], %34 {strides = array<i32>} : memref<1x4x2x128xf32, #tpu.memory_space<vmem>>, vector<1x1x2x128xf32>,
    %35 = arith.addf %13, %17 : vector<2x2x128xf32>
    %cst_22 = arith.constant dense<0.000000e+00> : vector<2x128xf32>
    %36 = vector.multi_reduction <add>, %35, %cst_22 [1] : vector<2x2x128xf32> to vector<2x128xf32>
    %c0_23 = arith.constant 0 : index
    %c3 = arith.constant 3 : index
    %c0_24 = arith.constant 0 : index
    %c0_25 = arith.constant 0 : index
    %37 = vector.load %arg3[%c0_23, %c3, %c0_24, %c0_25] : memref<1x4x2x128xf32, #tpu.memory_space<vmem>>, vector<1x1x2x128xf32>
    %38 = vector.shape_cast %37 : vector<1x1x2x128xf32> to vector<2x128xf32>
    %39 = vector.shape_cast %36 : vector<2x128xf32> to vector<1x1x2x128xf32>
    tpu.vector_store %arg3[%c0_23, %c3, %c0_24, %c0_25], %39 {strides = array<i32>} : memref<1x4x2x128xf32, #tpu.memory_space<vmem>>, vector<1x1x2x128xf32>,
    return
  }
  func.func @transform_0(%arg0: i32) -> (i32, i32, i32) {
    %c0_i32 = arith.constant 0 : i32
    %c0_i32_0 = arith.constant 0 : i32
    %c0_i32_1 = arith.constant 0 : i32
    return %c0_i32, %arg0, %c0_i32_0 : i32, i32, i32
  }
  func.func @transform_1(%arg0: i32) -> (i32, i32, i32) {
    %c0_i32 = arith.constant 0 : i32
    %c0_i32_0 = arith.constant 0 : i32
    %c0_i32_1 = arith.constant 0 : i32
    return %c0_i32, %arg0, %c0_i32_0 : i32, i32, i32
  }
  func.func @transform_2(%arg0: i32) -> (i32, i32, i32, i32) {
    %c0_i32 = arith.constant 0 : i32
    %c0_i32_0 = arith.constant 0 : i32
    %c0_i32_1 = arith.constant 0 : i32
    %c0_i32_2 = arith.constant 0 : i32
    return %arg0, %c0_i32, %c0_i32_0, %c0_i32_1 : i32, i32, i32, i32
  }
}

</mosaic_0001>

<llo_original>
// kernel: dice_loss_forward.1
$region0: #{dice_loss_forward.1}
  #allocation0 [shape = 'u32[]', space=smem, size = 0x4, offset = 0x4, fixed_abs, tag = 'smem constant byte address 0x4 - core index']
  #allocation1 [shape = 'u32[72,128]{1,0:T(1,128)}', space=vmem, size = 0x9000, scoped, tag = 'internal scratch']
  %s0 = inlined_call_operand.vmem [shape: f32[2,2,128], index: 0, kind: input, shape index: {}]
  %s1 = inlined_call_operand.vmem [shape: bf16[2,2,128], index: 1, kind: input, shape index: {}]
  %s2 = inlined_call_operand.vmem [shape: f32[1,4,2,128], index: 2, kind: output, shape index: {}]
  %s3 = sld [smem:[#allocation0]]
  $region18: #{dice_loss_forward.1} parent=0
    _
  %s5 = ssub.s32 1, %s3
  %s6 = scalar_select 0, %s5, %s3
  // Predicated region
  $region2: #{dice_loss_forward.1} parent=0 // pred_check
    _
  $region3: #{dice_loss_forward.1} parent=0 // pred_check_branch
    %8 = sbr.rel (0) target = $region5
  $region4: #{dice_loss_forward.1} parent=0 // pred_region
    _
  $region5: #{dice_loss_forward.1} parent=0 // pred_fallthru
    _
  // Predicated region
  $region6: #{dice_loss_forward.1} parent=0 // pred_check
    _
  $region7: #{dice_loss_forward.1} parent=0 // pred_check_branch
    %10 = sbr.rel (0) target = $region9
  $region8: #{dice_loss_forward.1} parent=0 // pred_region
    _
  $region9: #{dice_loss_forward.1} parent=0 // pred_fallthru
    _
  %v11 = vld [vmem:[%s0] sm:$0x3]
  %v12 = vld [vmem:[%s0 + $0x2] sm:$0x3]
  %v13 = vld [vmem:[%s1] sm:$0x1]
  %v14 = vld [vmem:[%s1 + $0x1] sm:$0x1]
  %v15 = vunpack.c.l.bf16 %v13
  %v16 = vunpack.c.l.bf16 %v14
  %v17 = vmul.f32 %v11, 0.5
  %v18 = vmul.f32 %v12, 0.5
  %v19 = vtanh.pop %v17
  %v20 = vtanh.pop %v18
  %v21 = vmul.f32 %v19, 0.5
  %v22 = vmul.f32 %v20, 0.5
  %v23 = vadd.f32 %v21, 0.5
  %v24 = vadd.f32 %v22, 0.5
  %vm25 = vcmp.gt.f32.partialorder %v11, 0.0
  %vm26 = vcmp.gt.f32.partialorder %v12, 0.0
  %v27 = vsel %vm25, 1, 0
  %v28 = vsel %vm26, 1, 0
  %v29 = vcvt.s32.f32 %v27
  %v30 = vcvt.s32.f32 %v28
  %vm31 = vcmp.gt.f32.partialorder %v15, 0.5
  %vm32 = vcmp.gt.f32.partialorder %v16, 0.5
  %v33 = vsel %vm31, 1, 0
  %v34 = vsel %vm32, 1, 0
  %v35 = vcvt.s32.f32 %v33
  %v36 = vcvt.s32.f32 %v34
  %v37 = vmul.f32 %v23, %v15
  %v38 = vmul.f32 %v24, %v16
  %vm39 = vcmask 1041408
  %v40 = vsel %vm39, %v37, 0.0
  %v41 = vrot.slane %v40, 4
  %v42 = vadd.f32 %v40, %v41
  %v43 = vrot.slane %v42, 2
  %v44 = vadd.f32 %v42, %v43
  %v45 = vrot.slane %v44, 1
  %v46 = vadd.f32 %v44, %v45
  %v47 = vsel %vm39, %v38, 0.0
  %v48 = vrot.slane %v47, 4
  %v49 = vadd.f32 %v47, %v48
  %v50 = vrot.slane %v49, 2
  %v51 = vadd.f32 %v49, %v50
  %v52 = vrot.slane %v51, 1
  %v53 = vadd.f32 %v51, %v52
  %vm56 = vcmask 1041409
  %v57 = vsel %vm56, %v53, %v46
  %59 = vst [vmem:[%s2] sm:$0x3] %v57
  %v60 = vmul.f32 %v23, %v23
  %v61 = vmul.f32 %v24, %v24
  %v62 = vmul.f32 %v15, %v15
  %v63 = vmul.f32 %v16, %v16
  %v64 = vadd.f32 %v60, %v62
  %v65 = vadd.f32 %v61, %v63
  %v66 = vsel %vm39, %v64, 0.0
  %v67 = vrot.slane %v66, 4
  %v68 = vadd.f32 %v66, %v67
  %v69 = vrot.slane %v68, 2
  %v70 = vadd.f32 %v68, %v69
  %v71 = vrot.slane %v70, 1
  %v72 = vadd.f32 %v70, %v71
  %v73 = vsel %vm39, %v65, 0.0
  %v74 = vrot.slane %v73, 4
  %v75 = vadd.f32 %v73, %v74
  %v76 = vrot.slane %v75, 2
  %v77 = vadd.f32 %v75, %v76
  %v78 = vrot.slane %v77, 1
  %v79 = vadd.f32 %v77, %v78
  %v82 = vsel %vm56, %v79, %v72
  %s84 = scalar_lea.vmem %s2, 2
  %85 = vst [vmem:[%s84] sm:$0x3] %v82
  %v86 = vmul.f32 %v29, %v35
  %v87 = vmul.f32 %v30, %v36
  %v88 = vsel %vm39, %v86, 0.0
  %v89 = vrot.slane %v88, 4
  %v90 = vadd.f32 %v88, %v89
  %v91 = vrot.slane %v90, 2
  %v92 = vadd.f32 %v90, %v91
  %v93 = vrot.slane %v92, 1
  %v94 = vadd.f32 %v92, %v93
  %v95 = vsel %vm39, %v87, 0.0
  %v96 = vrot.slane %v95, 4
  %v97 = vadd.f32 %v95, %v96
  %v98 = vrot.slane %v97, 2
  %v99 = vadd.f32 %v97, %v98
  %v100 = vrot.slane %v99, 1
  %v101 = vadd.f32 %v99, %v100
  %v104 = vsel %vm56, %v101, %v94
  %s106 = scalar_lea.vmem %s2, 4
  %107 = vst [vmem:[%s106] sm:$0x3] %v104
  %v108 = vadd.f32 %v29, %v35
  %v109 = vadd.f32 %v30, %v36
  %v110 = vsel %vm39, %v108, 0.0
  %v111 = vrot.slane %v110, 4
  %v112 = vadd.f32 %v110, %v111
  %v113 = vrot.slane %v112, 2
  %v114 = vadd.f32 %v112, %v113
  %v115 = vrot.slane %v114, 1
  %v116 = vadd.f32 %v114, %v115
  %v117 = vsel %vm39, %v109, 0.0
  %v118 = vrot.slane %v117, 4
  %v119 = vadd.f32 %v117, %v118
  %v120 = vrot.slane %v119, 2
  %v121 = vadd.f32 %v119, %v120
  %v122 = vrot.slane %v121, 1
  %v123 = vadd.f32 %v121, %v122
  %v126 = vsel %vm56, %v123, %v116
  %s128 = scalar_lea.vmem %s2, 6
  %129 = vst [vmem:[%s128] sm:$0x3] %v126
  // Predicated region
  $region10: #{dice_loss_forward.1} parent=0 // pred_check
    _
  $region11: #{dice_loss_forward.1} parent=0 // pred_check_branch
    %131 = sbr.rel (0) target = $region13
  $region12: #{dice_loss_forward.1} parent=0 // pred_region
    _
  $region13: #{dice_loss_forward.1} parent=0 // pred_fallthru
    _
  // Predicated region
  $region14: #{dice_loss_forward.1} parent=0 // pred_check
    _
  $region15: #{dice_loss_forward.1} parent=0 // pred_check_branch
    %133 = sbr.rel (0) target = $region17
  $region16: #{dice_loss_forward.1} parent=0 // pred_region
    _
  $region17: #{dice_loss_forward.1} parent=0 // pred_fallthru
    _

</llo_original>
